<compile_context>
chip_gen: v5e
topology: v5e:2x2
jax: 0.10.0
libtpu: 0.0.40
codegen_flags: <defaults>
</compile_context>

<pallas_src>
import jax
import jax.numpy as jnp
import numpy as np
from jax.experimental import pallas as pl
from jax.experimental.pallas import tpu as pltpu

_LANE = 128
_MAX_TILE = 32768  # lanes per grid step; 2 * 32768 * 4 B = 256 KiB per block


def _round_up(x, m):
    return ((x + m - 1) // m) * m


def _make_clip_kernel(width, height):
    """Kernel over a (B, TILE) lane-dense slab of flattened boxes.

    The flat layout interleaves coordinates as [x1, y1, x2, y2, x1, ...] and
    TILE is a multiple of 4, so (lane index & 3) recovers the coordinate id.
    """
    width = float(width)
    height = float(height)

    def kernel(boxes_ref, out_ref):
        b = boxes_ref[...]
        coord = jax.lax.broadcasted_iota(jnp.int32, b.shape, dimension=1) & 3
        # lower bound: 0 for x1/y1 (coord 0,1), -inf for x2/y2 (no min clamp)
        lo = jnp.where(coord < 2, jnp.float32(0.0), jnp.float32(-jnp.inf))
        # upper bound: +inf for x1/y1 (no max clamp), W for x2, H for y2
        hi = jnp.where(coord == 2, jnp.float32(width),
                       jnp.where(coord == 3, jnp.float32(height),
                                 jnp.float32(jnp.inf)))
        out_ref[...] = jnp.minimum(jnp.maximum(b, lo), hi).astype(out_ref.dtype)

    return kernel


@jax.jit
def clip_boxes(boxes, img):
    """boxes: (B, N, 4) float32; img: (B, C, H, W). Returns clipped boxes."""
    B, N, four = boxes.shape
    assert four == 4, "boxes last dim must be 4 (x1, y1, x2, y2)"
    _, _, H, W = img.shape  # only the static shape of `img` is used

    F = N * 4
    boxes2d = boxes.reshape(B, F)  # lane-dense flat layout (zero-copy reshape)

    tile = min(_MAX_TILE, _round_up(F, _LANE))
    Fp = _round_up(F, tile)
    if Fp != F:
        boxes2d = jnp.pad(boxes2d, ((0, 0), (0, Fp - F)))

    out = pl.pallas_call(
        _make_clip_kernel(W, H),
        out_shape=jax.ShapeDtypeStruct((B, Fp), boxes.dtype),
        grid=(Fp // tile,),
        in_specs=[pl.BlockSpec((B, tile), lambda i: (0, i))],
        out_specs=pl.BlockSpec((B, tile), lambda i: (0, i)),
        input_output_aliases={0: 0},  # mirror PyTorch's in-place update
        compiler_params=pltpu.CompilerParams(
            dimension_semantics=("parallel",)),
    )(boxes2d)

    return out[:, :F].reshape(B, N, 4)


def _reference_clip(boxes, img):
    """Pure-JAX reference (same math as the PyTorch module)."""
    H, W = img.shape[2], img.shape[3]
    x1 = jnp.maximum(boxes[:, :, 0], 0.0)
    y1 = jnp.maximum(boxes[:, :, 1], 0.0)
    x2 = jnp.minimum(boxes[:, :, 2], float(W))
    y2 = jnp.minimum(boxes[:, :, 3], float(H))
    return jnp.stack([x1, y1, x2, y2], axis=-1)


if __name__ == "__main__":
    # Small shapes: batch=2, 32 boxes per image, image (2, 3, 16, 16).
    B, N = 2, 32
    C, H, W = 3, 16, 16

    key = jax.random.PRNGKey(0)
    k_boxes, k_img = jax.random.split(key, 2)

    # Random boxes straddling the image bounds so every clamp path is hit.
    boxes = jax.random.normal(k_boxes, (B, N, 4), jnp.float32) * 20.0
    img = jax.random.normal(k_img, (B, C, H, W), jnp.float32)

    out = clip_boxes(boxes, img)
    out = jax.block_until_ready(out)

    ref = _reference_clip(boxes, img)
    ref = jax.block_until_ready(ref)

    np.testing.assert_allclose(np.asarray(out), np.asarray(ref),
                               rtol=0.0, atol=0.0)
    print("KERNEL_OK")
</pallas_src>

<mosaic_0001>
module attributes {stable_mosaic.version = 11 : i64} {
  func.func @kernel(%arg0: i32, %arg1: memref<2x128xf32, #tpu.memory_space<vmem>>, %arg2: memref<2x128xf32, #tpu.memory_space<vmem>>) attributes {dimension_semantics = [#tpu.dimension_semantics<parallel>], iteration_bounds = array<i64: 1>, scalar_prefetch = 0 : i64, scratch_operands = 0 : i64, tpu.core_type = #tpu.core_type<tc>, window_params = [{transform_indices = @transform_0, window_bounds = array<i64: 2, 128>}, {transform_indices = @transform_1, window_bounds = array<i64: 2, 128>}]} {
    %c0 = arith.constant 0 : index
    %c0_0 = arith.constant 0 : index
    %0 = vector.load %arg1[%c0, %c0_0] : memref<2x128xf32, #tpu.memory_space<vmem>>, vector<2x128xf32>
    %1 = tpu.iota {dimensions = array<i32: 1>} : vector<2x128xi32>
    %c3_i32 = arith.constant 3 : i32
    %2 = vector.broadcast %c3_i32 : i32 to vector<2x128xi32>
    %3 = arith.andi %1, %2 : vector<2x128xi32>
    %c2_i32 = arith.constant 2 : i32
    %4 = vector.broadcast %c2_i32 : i32 to vector<2x128xi32>
    %5 = arith.cmpi slt, %3, %4 : vector<2x128xi32>
    %cst = arith.constant 0.000000e+00 : f32
    %cst_1 = arith.constant 0xFF800000 : f32
    %6 = vector.broadcast %cst : f32 to vector<2x128xf32>
    %7 = vector.broadcast %cst_1 : f32 to vector<2x128xf32>
    %8 = arith.select %5, %6, %7 : vector<2x128xi1>, vector<2x128xf32>
    %c2_i32_2 = arith.constant 2 : i32
    %9 = vector.broadcast %c2_i32_2 : i32 to vector<2x128xi32>
    %10 = arith.cmpi eq, %3, %9 : vector<2x128xi32>
    %c3_i32_3 = arith.constant 3 : i32
    %11 = vector.broadcast %c3_i32_3 : i32 to vector<2x128xi32>
    %12 = arith.cmpi eq, %3, %11 : vector<2x128xi32>
    %cst_4 = arith.constant 1.600000e+01 : f32
    %cst_5 = arith.constant 0x7F800000 : f32
    %13 = vector.broadcast %cst_4 : f32 to vector<2x128xf32>
    %14 = vector.broadcast %cst_5 : f32 to vector<2x128xf32>
    %15 = arith.select %12, %13, %14 : vector<2x128xi1>, vector<2x128xf32>
    %cst_6 = arith.constant 1.600000e+01 : f32
    %16 = vector.broadcast %cst_6 : f32 to vector<2x128xf32>
    %17 = arith.select %10, %16, %15 : vector<2x128xi1>, vector<2x128xf32>
    %18 = arith.maximumf %0, %8 : vector<2x128xf32>
    %19 = arith.minimumf %18, %17 : vector<2x128xf32>
    %c0_7 = arith.constant 0 : index
    %c0_8 = arith.constant 0 : index
    %20 = vector.load %arg2[%c0_7, %c0_8] : memref<2x128xf32, #tpu.memory_space<vmem>>, vector<2x128xf32>
    tpu.vector_store %arg2[%c0_7, %c0_8], %19 {strides = array<i32>} : memref<2x128xf32, #tpu.memory_space<vmem>>, vector<2x128xf32>,
    return
  }
  func.func @transform_0(%arg0: i32) -> (i32, i32) {
    %c0_i32 = arith.constant 0 : i32
    %c0_i32_0 = arith.constant 0 : i32
    return %c0_i32, %arg0 : i32, i32
  }
  func.func @transform_1(%arg0: i32) -> (i32, i32) {
    %c0_i32 = arith.constant 0 : i32
    %c0_i32_0 = arith.constant 0 : i32
    return %c0_i32, %arg0 : i32, i32
  }
}

</mosaic_0001>

<llo_original>
// kernel: clip_boxes.1
$region0: #{clip_boxes.1}
  #allocation0 [shape = 'u32[]', space=smem, size = 0x4, offset = 0x4, fixed_abs, tag = 'smem constant byte address 0x4 - core index']
  #allocation1 [shape = 'u32[72,128]{1,0:T(1,128)}', space=vmem, size = 0x9000, scoped, tag = 'internal scratch']
  %s0 = inlined_call_operand.vmem [shape: f32[2,128], index: 0, kind: input, shape index: {}, may-alias: {0,1}]
  %s1 = inlined_call_operand.vmem [shape: f32[2,128], index: 1, kind: output, shape index: {}, may-alias: {0,1}]
  %s2 = sld [smem:[#allocation0]]
  $region14: #{clip_boxes.1} parent=0
    _
  %s4 = ssub.s32 1, %s2
  %s5 = scalar_select 0, %s4, %s2
  // Predicated region
  $region2: #{clip_boxes.1} parent=0 // pred_check
    _
  $region3: #{clip_boxes.1} parent=0 // pred_check_branch
    %7 = sbr.rel (0) target = $region5
  $region4: #{clip_boxes.1} parent=0 // pred_region
    _
  $region5: #{clip_boxes.1} parent=0 // pred_fallthru
    _
  %v8 = vld [vmem:[%s0] sm:$0x3]
  %v9 = vlaneseq
  %v10 = vand.u32 %v9, 127
  %v11 = vand.u32 %v10, 3
  %vm12 = vcmp.lt.s32.totalorder %v11, 2
  %v13 = vsel %vm12, 0.0, -inf
  %vm14 = vcmp.eq.s32.totalorder %v11, 2
  %vm15 = vcmp.eq.s32.totalorder %v11, 3
  %v16 = vsel %vm15, 16.0, inf
  %v17 = vsel %vm14, 16.0, %v16
  %v18 = vmax.f32 %v8, %v13
  %v19 = vmin.f32 %v18, %v17
  %20 = vst [vmem:[%s1] sm:$0x3] %v19
  // Predicated region
  $region6: #{clip_boxes.1} parent=0 // pred_check
    _
  $region7: #{clip_boxes.1} parent=0 // pred_check_branch
    %22 = sbr.rel (0) target = $region9
  $region8: #{clip_boxes.1} parent=0 // pred_region
    _
  $region9: #{clip_boxes.1} parent=0 // pred_fallthru
    _
  // Predicated region
  $region10: #{clip_boxes.1} parent=0 // pred_check
    _
  $region11: #{clip_boxes.1} parent=0 // pred_check_branch
    %24 = sbr.rel (0) target = $region13
  $region12: #{clip_boxes.1} parent=0 // pred_region
    _
  $region13: #{clip_boxes.1} parent=0 // pred_fallthru
    _

</llo_original>
